<compile_context>
chip_gen: v6e
topology: v6e:2x2x1
jax: 0.10.0
libtpu: 0.0.40
codegen_flags: <defaults>
</compile_context>

<pallas_src>
import functools

import jax
import jax.numpy as jnp
from jax.experimental import pallas as pl
from jax.experimental.pallas import tpu as pltpu

IGNORE_LABEL = 255
# Class weights from the module __init__ (deterministic, in-script).
CLASS_WEIGHTS = (4.4286523, 3.443227, 9.627174, 2.9082294, 6.9883366,
                 5.2119217, 9.490196, 9.150478, 7.1654587, 9.888601, 7.5455384)
NUM_CLASSES = len(CLASS_WEIGHTS)
MAX_TILE = 65536          # pixels (lanes) per grid step; multiple of 128.
_LANES = 128


def _bf16_native_ok() -> bool:
    """bf16-native max/select is a win on v6e/v7x; v5e and older lack bf16 VPU."""
    try:
        kind = jax.devices()[0].device_kind.lower()
    except Exception:
        return False
    return not any(tag in kind for tag in ("v2", "v3", "v4", "v5"))


_BF16_NATIVE = _bf16_native_ok()


def _ce2d_kernel(logits_ref, targets_ref, out_ref, *, hw, tile, ragged,
                 native_reduce):
    """One (sample, pixel-tile) grid step.

    log_softmax over the channel (sublane) axis, one-hot pick of the target
    log-prob and class weight, and a per-tile [sum(w*logp), sum(w)] partial
    written as a lane-dense (2, 128) block.  No cross-step carry, so both
    grid axes can be 'parallel' (v7x dual-TensorCore split).
    """
    x = logits_ref[...]                                  # (C, T) native dtype
    t = targets_ref[...].astype(jnp.int32)               # (1, T)

    # (C, 1) class-index column; broadcasting against the (1, T) targets gives
    # the one-hot without materializing a (C, T) iota.
    cls = jax.lax.broadcasted_iota(jnp.int32, (x.shape[0], 1), 0)
    onehot = cls == t                                    # (C, T)

    # Class weights as a compile-time (C, 1) constant, built from scalar
    # immediates + the iota (no weight input, no array-constant capture).
    w = jnp.zeros((x.shape[0], 1), jnp.float32)
    for idx, wv in enumerate(CLASS_WEIGHTS):
        w = jnp.where(cls == idx, jnp.float32(wv), w)

    if native_reduce:
        # bf16 path (v6e/v7x): max and the one-hot pick are exact in bf16 and
        # run at half the vreg count; only the exp/lse chain is upcast to f32.
        m = jnp.max(x, axis=0, keepdims=True).astype(jnp.float32)       # (1,T)
        picked_x = jnp.sum(jnp.where(onehot, x, 0), axis=0,
                           keepdims=True).astype(jnp.float32)           # (1,T)
        xf = x.astype(jnp.float32)
    else:
        xf = x.astype(jnp.float32)
        m = jnp.max(xf, axis=0, keepdims=True)
        picked_x = jnp.sum(jnp.where(onehot, xf, 0.0), axis=0, keepdims=True)

    # log-sum-exp over channels, per pixel (lane).
    lse = jnp.log(jnp.sum(jnp.exp(xf - m), axis=0, keepdims=True)) + m  # (1,T)

    # w[target] per pixel; ignore_index=255 never matches the one-hot, so it
    # contributes exactly 0 to both sums -- no explicit ignore mask needed.
    picked_w = jnp.sum(jnp.where(onehot, w, 0.0), axis=0, keepdims=True)

    num_l = picked_w * (picked_x - lse)                  # (1, T)
    den_l = picked_w
    if ragged:
        # Last tile reads past hw: garbage lanes may carry NaN/Inf through
        # lse, so mask with a *select* (never a multiply by the mask).
        lane = jax.lax.broadcasted_iota(jnp.int32, (1, tile), 1)
        in_range = pl.program_id(1) * tile + lane < hw
        num_l = jnp.where(in_range, num_l, 0.0)
        den_l = jnp.where(in_range, den_l, 0.0)

    out_ref[0:1, :] = jnp.full((1, _LANES), jnp.sum(num_l), jnp.float32)
    out_ref[1:2, :] = jnp.full((1, _LANES), jnp.sum(den_l), jnp.float32)


@functools.partial(jax.jit, static_argnames=("max_tile",))
def cross_entropy_loss_2d(outputs, targets, *, max_tile=MAX_TILE):
    """outputs: (N, C, H, W) float (f32 or bf16); targets: (N, H, W) integer
    labels (int32 or uint8) with 255 = ignore.  Returns the scalar
    mean-reduced weighted NLL (NaN if every pixel is ignored, as in PyTorch).
    """
    n, c, h, w = outputs.shape
    assert c == NUM_CLASSES
    hw = h * w

    # Free views of the natural NCHW layout -- no transpose / pad in HBM.
    logits = outputs.reshape(n, c, hw)                   # keep native dtype
    tgt = targets.reshape(n, 1, hw)
    if tgt.dtype != jnp.int32 and tgt.dtype != jnp.uint8:
        # uint8 labels pass straight through (1 B/pixel, a few % win on the
        # HBM-bound v5e path); anything else is normalized to int32.  No copy
        # is made when the caller already holds int32 / uint8.
        tgt = tgt.astype(jnp.int32)

    # Tile = whole image if it fits, else MAX_TILE (a multiple of 128).
    tile = hw if hw <= max_tile else max_tile
    if hw > max_tile:
        assert max_tile % 128 == 0, "max_tile must be a multiple of 128"
    grid_i = pl.cdiv(hw, tile)
    ragged = (hw % tile) != 0
    native_reduce = (logits.dtype == jnp.bfloat16) and _BF16_NATIVE

    kernel = functools.partial(_ce2d_kernel, hw=hw, tile=tile, ragged=ragged,
                               native_reduce=native_reduce)

    cparams = dict(dimension_semantics=("parallel", "parallel"))
    if tile > 32768:
        # Large tiles (several MB of double-buffered blocks + f32
        # intermediates) can exceed the default scoped-VMEM budget; raise it
        # while staying below v7x's 64 MiB physical VMEM per TensorCore.
        cparams["vmem_limit_bytes"] = 48 * 1024 * 1024

    partials = pl.pallas_call(
        kernel,
        out_shape=jax.ShapeDtypeStruct((n, grid_i, 2, _LANES), jnp.float32),
        grid=(n, grid_i),
        in_specs=[
            # N dim squeezed: kernel sees (C, tile) / (1, tile).
            pl.BlockSpec((None, c, tile), lambda b, i: (b, 0, i)),
            pl.BlockSpec((None, 1, tile), lambda b, i: (b, 0, i)),
        ],
        # One lane-dense (2, 128) partial [num, den] per grid step (lanes are
        # replicated; lane 0 is read back).  No scratch carry -> both axes
        # parallel, so v7x's two TensorCores can split the grid.
        out_specs=pl.BlockSpec((None, None, 2, _LANES),
                               lambda b, i: (b, i, 0, 0)),
        compiler_params=pltpu.CompilerParams(**cparams),
    )(logits, tgt)

    num = jnp.sum(partials[:, :, 0, 0])   # sum_i w[t_i] * logp[t_i, i]
    den = jnp.sum(partials[:, :, 1, 0])   # sum_i w[t_i]
    # Mean reduction of weighted NLL (PyTorch default): -sum(w*logp)/sum(w).
    return -num / den


def _reference_loss(outputs, targets):
    """Pure-JAX reference matching F.log_softmax + nn.NLLLoss(weight, ignore)."""
    weight = jnp.asarray(CLASS_WEIGHTS, dtype=jnp.float32)
    tgt = targets.astype(jnp.int32)
    logp = jax.nn.log_softmax(outputs.astype(jnp.float32), axis=1)
    valid = tgt != IGNORE_LABEL
    t_safe = jnp.where(valid, tgt, 0)
    picked = jnp.take_along_axis(logp, t_safe[:, None], axis=1)[:, 0]
    w_t = weight[t_safe]
    num = jnp.sum(jnp.where(valid, w_t * picked, 0.0))
    den = jnp.sum(jnp.where(valid, w_t, 0.0))
    return -num / den


if __name__ == "__main__":
    key = jax.random.PRNGKey(0)
    k1, k2, k3, k4, k5 = jax.random.split(key, 5)

    N, C, H, W = 2, NUM_CLASSES, 16, 16
    outputs = jax.random.normal(k1, (N, C, H, W), dtype=jnp.float32)
    targets = jax.random.randint(k2, (N, H, W), 0, C, dtype=jnp.int32)
    # Sprinkle some ignored pixels (label 255).
    ignore_mask = jax.random.bernoulli(k3, 0.1, (N, H, W))
    targets = jnp.where(ignore_mask, IGNORE_LABEL, targets)

    # 1) f32 logits, int32 labels.
    loss = cross_entropy_loss_2d(outputs, targets)
    jax.block_until_ready(loss)
    ref = _reference_loss(outputs, targets)
    assert jnp.allclose(loss, ref, rtol=1e-5, atol=1e-5), (loss, ref)

    # 2) bf16 logits: kernel reads bf16 from HBM (half the bytes); native
    #    bf16 max/pick path on v6e/v7x, f32-upcast path on v5e and older.
    outputs_bf16 = outputs.astype(jnp.bfloat16)
    loss_bf16 = cross_entropy_loss_2d(outputs_bf16, targets)
    jax.block_until_ready(loss_bf16)
    ref_bf16 = _reference_loss(outputs_bf16, targets)
    assert jnp.allclose(loss_bf16, ref_bf16, rtol=1e-4, atol=1e-4), (
        loss_bf16, ref_bf16)

    # 3) Ragged last tile: hw = 400 with a forced 128-pixel tile exercises the
    #    masked tail (select-based, NaN-safe) path at small scale.
    H2, W2 = 16, 25
    outputs2 = jax.random.normal(k4, (N, C, H2, W2), dtype=jnp.float32)
    targets2 = jax.random.randint(k5, (N, H2, W2), 0, C, dtype=jnp.int32)
    loss2 = cross_entropy_loss_2d(outputs2, targets2, max_tile=128)
    jax.block_until_ready(loss2)
    ref2 = _reference_loss(outputs2, targets2)
    assert jnp.allclose(loss2, ref2, rtol=1e-5, atol=1e-5), (loss2, ref2)

    print("KERNEL_OK")
</pallas_src>

<mosaic_0001>
module attributes {stable_mosaic.version = 11 : i64} {
  func.func @_ce2d_kernel(%arg0: i32, %arg1: i32, %arg2: memref<1x11x256xf32, #tpu.memory_space<vmem>>, %arg3: memref<1x1x256xi32, #tpu.memory_space<vmem>>, %arg4: memref<1x1x2x128xf32, #tpu.memory_space<vmem>>) attributes {dimension_semantics = [#tpu.dimension_semantics<parallel>, #tpu.dimension_semantics<parallel>], iteration_bounds = array<i64: 2, 1>, scalar_prefetch = 0 : i64, scratch_operands = 0 : i64, tpu.core_type = #tpu.core_type<tc>, window_params = [{transform_indices = @transform_0, window_bounds = array<i64: 1, 11, 256>}, {transform_indices = @transform_1, window_bounds = array<i64: 1, 1, 256>}, {transform_indices = @transform_2, window_bounds = array<i64: 1, 1, 2, 128>}]} {
    %c0 = arith.constant 0 : index
    %c0_0 = arith.constant 0 : index
    %c0_1 = arith.constant 0 : index
    %0 = vector.load %arg2[%c0, %c0_0, %c0_1] : memref<1x11x256xf32, #tpu.memory_space<vmem>>, vector<1x11x256xf32>
    %1 = vector.shape_cast %0 : vector<1x11x256xf32> to vector<11x256xf32>
    %c0_2 = arith.constant 0 : index
    %c0_3 = arith.constant 0 : index
    %c0_4 = arith.constant 0 : index
    %2 = vector.load %arg3[%c0_2, %c0_3, %c0_4] : memref<1x1x256xi32, #tpu.memory_space<vmem>>, vector<1x1x256xi32>
    %3 = vector.shape_cast %2 : vector<1x1x256xi32> to vector<1x256xi32>
    %4 = tpu.iota {dimensions = array<i32: 0>} : vector<11x1xi32>
    %5 = vector.broadcast %4 : vector<11x1xi32> to vector<11x256xi32>
    %6 = vector.broadcast %3 : vector<1x256xi32> to vector<11x256xi32>
    %7 = arith.cmpi eq, %5, %6 : vector<11x256xi32>
    %cst = arith.constant 0.000000e+00 : f32
    %8 = vector.broadcast %cst : f32 to vector<11x1xf32>
    %c0_i32 = arith.constant 0 : i32
    %9 = vector.broadcast %c0_i32 : i32 to vector<11x1xi32>
    %10 = arith.cmpi eq, %4, %9 : vector<11x1xi32>
    %cst_5 = arith.constant 4.42865229 : f32
    %11 = vector.broadcast %cst_5 : f32 to vector<11x1xf32>
    %12 = arith.select %10, %11, %8 : vector<11x1xi1>, vector<11x1xf32>
    %c1_i32 = arith.constant 1 : i32
    %13 = vector.broadcast %c1_i32 : i32 to vector<11x1xi32>
    %14 = arith.cmpi eq, %4, %13 : vector<11x1xi32>
    %cst_6 = arith.constant 3.44322705 : f32
    %15 = vector.broadcast %cst_6 : f32 to vector<11x1xf32>
    %16 = arith.select %14, %15, %12 : vector<11x1xi1>, vector<11x1xf32>
    %c2_i32 = arith.constant 2 : i32
    %17 = vector.broadcast %c2_i32 : i32 to vector<11x1xi32>
    %18 = arith.cmpi eq, %4, %17 : vector<11x1xi32>
    %cst_7 = arith.constant 9.62717437 : f32
    %19 = vector.broadcast %cst_7 : f32 to vector<11x1xf32>
    %20 = arith.select %18, %19, %16 : vector<11x1xi1>, vector<11x1xf32>
    %c3_i32 = arith.constant 3 : i32
    %21 = vector.broadcast %c3_i32 : i32 to vector<11x1xi32>
    %22 = arith.cmpi eq, %4, %21 : vector<11x1xi32>
    %cst_8 = arith.constant 2.90822935 : f32
    %23 = vector.broadcast %cst_8 : f32 to vector<11x1xf32>
    %24 = arith.select %22, %23, %20 : vector<11x1xi1>, vector<11x1xf32>
    %c4_i32 = arith.constant 4 : i32
    %25 = vector.broadcast %c4_i32 : i32 to vector<11x1xi32>
    %26 = arith.cmpi eq, %4, %25 : vector<11x1xi32>
    %cst_9 = arith.constant 6.98833656 : f32
    %27 = vector.broadcast %cst_9 : f32 to vector<11x1xf32>
    %28 = arith.select %26, %27, %24 : vector<11x1xi1>, vector<11x1xf32>
    %c5_i32 = arith.constant 5 : i32
    %29 = vector.broadcast %c5_i32 : i32 to vector<11x1xi32>
    %30 = arith.cmpi eq, %4, %29 : vector<11x1xi32>
    %cst_10 = arith.constant 5.21192169 : f32
    %31 = vector.broadcast %cst_10 : f32 to vector<11x1xf32>
    %32 = arith.select %30, %31, %28 : vector<11x1xi1>, vector<11x1xf32>
    %c6_i32 = arith.constant 6 : i32
    %33 = vector.broadcast %c6_i32 : i32 to vector<11x1xi32>
    %34 = arith.cmpi eq, %4, %33 : vector<11x1xi32>
    %cst_11 = arith.constant 9.49019622 : f32
    %35 = vector.broadcast %cst_11 : f32 to vector<11x1xf32>
    %36 = arith.select %34, %35, %32 : vector<11x1xi1>, vector<11x1xf32>
    %c7_i32 = arith.constant 7 : i32
    %37 = vector.broadcast %c7_i32 : i32 to vector<11x1xi32>
    %38 = arith.cmpi eq, %4, %37 : vector<11x1xi32>
    %cst_12 = arith.constant 9.15047836 : f32
    %39 = vector.broadcast %cst_12 : f32 to vector<11x1xf32>
    %40 = arith.select %38, %39, %36 : vector<11x1xi1>, vector<11x1xf32>
    %c8_i32 = arith.constant 8 : i32
    %41 = vector.broadcast %c8_i32 : i32 to vector<11x1xi32>
    %42 = arith.cmpi eq, %4, %41 : vector<11x1xi32>
    %cst_13 = arith.constant 7.16545867 : f32
    %43 = vector.broadcast %cst_13 : f32 to vector<11x1xf32>
    %44 = arith.select %42, %43, %40 : vector<11x1xi1>, vector<11x1xf32>
    %c9_i32 = arith.constant 9 : i32
    %45 = vector.broadcast %c9_i32 : i32 to vector<11x1xi32>
    %46 = arith.cmpi eq, %4, %45 : vector<11x1xi32>
    %cst_14 = arith.constant 9.8886013 : f32
    %47 = vector.broadcast %cst_14 : f32 to vector<11x1xf32>
    %48 = arith.select %46, %47, %44 : vector<11x1xi1>, vector<11x1xf32>
    %c10_i32 = arith.constant 10 : i32
    %49 = vector.broadcast %c10_i32 : i32 to vector<11x1xi32>
    %50 = arith.cmpi eq, %4, %49 : vector<11x1xi32>
    %cst_15 = arith.constant 7.54553843 : f32
    %51 = vector.broadcast %cst_15 : f32 to vector<11x1xf32>
    %52 = arith.select %50, %51, %48 : vector<11x1xi1>, vector<11x1xf32>
    %cst_16 = arith.constant dense<0xFF800000> : vector<256xf32>
    %53 = vector.multi_reduction <maximumf>, %1, %cst_16 [0] : vector<11x256xf32> to vector<256xf32>
    %54 = vector.shape_cast %53 : vector<256xf32> to vector<1x256xf32>
    %cst_17 = arith.constant 0.000000e+00 : f32
    %55 = vector.broadcast %cst_17 : f32 to vector<11x256xf32>
    %56 = arith.select %7, %1, %55 : vector<11x256xi1>, vector<11x256xf32>
    %cst_18 = arith.constant dense<0.000000e+00> : vector<256xf32>
    %57 = vector.multi_reduction <add>, %56, %cst_18 [0] : vector<11x256xf32> to vector<256xf32>
    %58 = vector.shape_cast %57 : vector<256xf32> to vector<1x256xf32>
    %59 = vector.broadcast %54 : vector<1x256xf32> to vector<11x256xf32>
    %60 = arith.subf %1, %59 : vector<11x256xf32>
    %61 = math.exp %60 : vector<11x256xf32>
    %cst_19 = arith.constant dense<0.000000e+00> : vector<256xf32>
    %62 = vector.multi_reduction <add>, %61, %cst_19 [0] : vector<11x256xf32> to vector<256xf32>
    %63 = vector.shape_cast %62 : vector<256xf32> to vector<1x256xf32>
    %64 = math.log %63 : vector<1x256xf32>
    %65 = arith.addf %64, %54 : vector<1x256xf32>
    %cst_20 = arith.constant 0.000000e+00 : f32
    %66 = vector.shape_cast %52 : vector<11x1xf32> to vector<11x1xf32>
    %67 = vector.broadcast %66 : vector<11x1xf32> to vector<11x256xf32>
    %68 = vector.broadcast %cst_20 : f32 to vector<11x256xf32>
    %69 = arith.select %7, %67, %68 : vector<11x256xi1>, vector<11x256xf32>
    %cst_21 = arith.constant dense<0.000000e+00> : vector<256xf32>
    %70 = vector.multi_reduction <add>, %69, %cst_21 [0] : vector<11x256xf32> to vector<256xf32>
    %71 = vector.shape_cast %70 : vector<256xf32> to vector<1x256xf32>
    %72 = arith.subf %58, %65 : vector<1x256xf32>
    %73 = arith.mulf %71, %72 : vector<1x256xf32>
    %74 = vector.shape_cast %73 : vector<1x256xf32> to vector<1x1x256xf32>
    %cst_22 = arith.constant dense<0.000000e+00> : vector<1xf32>
    %75 = vector.multi_reduction <add>, %74, %cst_22 [1, 2] : vector<1x1x256xf32> to vector<1xf32>
    %76 = vector.shape_cast %75 : vector<1xf32> to vector<1x1x1xf32>
    %77 = vector.extract %76[0, 0, 0] : f32 from vector<1x1x1xf32>
    %78 = vector.broadcast %77 : f32 to vector<1x128xf32>
    %c0_23 = arith.constant 0 : index
    %c0_24 = arith.constant 0 : index
    %c0_25 = arith.constant 0 : index
    %c0_26 = arith.constant 0 : index
    %79 = vector.load %arg4[%c0_23, %c0_24, %c0_25, %c0_26] : memref<1x1x2x128xf32, #tpu.memory_space<vmem>>, vector<1x1x1x128xf32>
    %80 = vector.shape_cast %79 : vector<1x1x1x128xf32> to vector<1x128xf32>
    %81 = vector.shape_cast %78 : vector<1x128xf32> to vector<1x1x1x128xf32>
    tpu.vector_store %arg4[%c0_23, %c0_24, %c0_25, %c0_26], %81 {strides = array<i32>} : memref<1x1x2x128xf32, #tpu.memory_space<vmem>>, vector<1x1x1x128xf32>,
    %82 = vector.shape_cast %71 : vector<1x256xf32> to vector<1x1x256xf32>
    %cst_27 = arith.constant dense<0.000000e+00> : vector<1xf32>
    %83 = vector.multi_reduction <add>, %82, %cst_27 [1, 2] : vector<1x1x256xf32> to vector<1xf32>
    %84 = vector.shape_cast %83 : vector<1xf32> to vector<1x1x1xf32>
    %85 = vector.extract %84[0, 0, 0] : f32 from vector<1x1x1xf32>
    %86 = vector.broadcast %85 : f32 to vector<1x128xf32>
    %c0_28 = arith.constant 0 : index
    %c0_29 = arith.constant 0 : index
    %c1 = arith.constant 1 : index
    %c0_30 = arith.constant 0 : index
    %87 = vector.load %arg4[%c0_28, %c0_29, %c1, %c0_30] : memref<1x1x2x128xf32, #tpu.memory_space<vmem>>, vector<1x1x1x128xf32>
    %88 = vector.shape_cast %87 : vector<1x1x1x128xf32> to vector<1x128xf32>
    %89 = vector.shape_cast %86 : vector<1x128xf32> to vector<1x1x1x128xf32>
    tpu.vector_store %arg4[%c0_28, %c0_29, %c1, %c0_30], %89 {strides = array<i32>} : memref<1x1x2x128xf32, #tpu.memory_space<vmem>>, vector<1x1x1x128xf32>,
    return
  }
  func.func @transform_0(%arg0: i32, %arg1: i32) -> (i32, i32, i32) {
    %c0_i32 = arith.constant 0 : i32
    %c0_i32_0 = arith.constant 0 : i32
    return %arg0, %c0_i32, %arg1 : i32, i32, i32
  }
  func.func @transform_1(%arg0: i32, %arg1: i32) -> (i32, i32, i32) {
    %c0_i32 = arith.constant 0 : i32
    %c0_i32_0 = arith.constant 0 : i32
    return %arg0, %c0_i32, %arg1 : i32, i32, i32
  }
  func.func @transform_2(%arg0: i32, %arg1: i32) -> (i32, i32, i32, i32) {
    %c0_i32 = arith.constant 0 : i32
    %c0_i32_0 = arith.constant 0 : i32
    %c0_i32_1 = arith.constant 0 : i32
    return %arg0, %arg1, %c0_i32, %c0_i32_0 : i32, i32, i32, i32
  }
}

</mosaic_0001>

<llo_original>
// kernel: cross_entropy_loss_2d.1
$region0: #{cross_entropy_loss_2d.1}
  #allocation0 [shape = 'u32[]', space=smem, size = 0x4, offset = 0x4, fixed_abs, tag = 'smem constant byte address 0x4 - core index']
  #allocation1 [shape = 'u32[144,128]{1,0:T(1,128)}', space=vmem, size = 0x12000, scoped, tag = 'internal scratch']
  %s0 = inlined_call_operand.vmem [shape: f32[2,11,256], index: 0, kind: input, shape index: {}]
  %s1 = inlined_call_operand.vmem [shape: s32[2,1,256], index: 1, kind: input, shape index: {}]
  %s2 = inlined_call_operand.vmem [shape: f32[2,1,2,128], index: 2, kind: output, shape index: {}]
  %s3 = sld [smem:[#allocation0]]
  $region41: #{cross_entropy_loss_2d.1} parent=0
    _
  %s5 = ssub.s32 1, %s3
  %s6 = scalar_select 0, %s5, %s3
  loop: start=0, step=1, limit=4
  $region2: #{cross_entropy_loss_2d.1} parent=0 // loop_pre_header
    _
  $region3: #{cross_entropy_loss_2d.1} parent=0 // loop_header
    %s8 = sphi 0, %s12
    %p9 = scmp.ge.s32.totalorder %s8, 4
    %s15 = sphi 0, %s27
    %s16 = sphi 0, %s23
    %s17 = sphi 0, %s15
    %s18 = sphi 0, %s16
    %s19 = sphi 0, %s17
    %s20 = sphi 0, %s18
    %s32 = sphi 0, %s34
    %s35 = sphi 0, %s32
    %s36 = sphi 0, %s35
    %s52 = sphi 0, %s36
    %s60 = sphi 0, %s62
    %s63 = sphi 0, %s60
    %s64 = sphi 0, %s63
    %s80 = sphi 0, %s64
    %s88 = sphi 0, %s90
    %s91 = sphi 0, %s88
    %s92 = sphi 0, %s91
    %s108 = sphi 0, %s92
  $region4: #{cross_entropy_loss_2d.1} parent=0 // loop_header_branch
    %11 = sbr.rel (%p9) target = $region8
  $region5: #{cross_entropy_loss_2d.1} parent=0 // loop_body
    %s13 = ssub.s32 %s8, 1
    %s14 = ssub.s32 %s8, 2
    %s21 = sadd.s32 1, %s16
    %p22 = scmp.ge.s32.totalorder %s21, 1
    %s23 = scalar_select %p22, 0, %s21
    %s24 = sadd.s32 1, %s15
    %s25 = scalar_select %p22, %s24, %s15
    %p26 = scmp.ge.s32.totalorder %s25, 2
    %s27 = scalar_select %p26, 0, %s25
    %s28 = ssub.s32 %s15, %s27
    %s29 = ssub.s32 %s16, %s23
    %s30 = sor.u32 %s28, %s29
    %p31 = scmp.eq.s32.totalorder %s30, 0
    %s33 = sadd.s32 %s32, 1
    %s34 = scalar_select %p31, %s32, %s33
    %p37 = pneg %p31
    %p38 = scmp.eq.s32.totalorder %s8, 1
    %p39 = por %p37, %p38
    %p40 = scmp.ne.s32.totalorder %s32, %s35
    %p41 = scmp.eq.s32.totalorder %s8, 0
    %p42 = por %p40, %p41
    %p43 = scmp.ne.s32.totalorder %s32, %s35
    %p44 = scmp.eq.s32.totalorder %s13, 1
    %p45 = por %p43, %p44
    %p46 = scmp.ne.s32.totalorder %s35, %s36
    %p47 = scmp.eq.s32.totalorder %s13, 0
    %p48 = por %p46, %p47
    %p49 = scmp.ne.s32.totalorder %s35, %s36
    %p50 = scmp.eq.s32.totalorder %s14, 1
    %p51 = por %p49, %p50
    %p53 = scmp.ne.s32.totalorder %s36, %s52
    %p54 = scmp.eq.s32.totalorder %s14, 0
    %p55 = por %p53, %p54
    %s56 = ssub.s32 %s15, %s27
    %s57 = ssub.s32 %s16, %s23
    %s58 = sor.u32 %s56, %s57
    %p59 = scmp.eq.s32.totalorder %s58, 0
    %s61 = sadd.s32 %s60, 1
    %s62 = scalar_select %p59, %s60, %s61
    %p65 = pneg %p59
    %p66 = scmp.eq.s32.totalorder %s8, 1
    %p67 = por %p65, %p66
    %p68 = scmp.ne.s32.totalorder %s60, %s63
    %p69 = scmp.eq.s32.totalorder %s8, 0
    %p70 = por %p68, %p69
    %p71 = scmp.ne.s32.totalorder %s60, %s63
    %p72 = scmp.eq.s32.totalorder %s13, 1
    %p73 = por %p71, %p72
    %p74 = scmp.ne.s32.totalorder %s63, %s64
    %p75 = scmp.eq.s32.totalorder %s13, 0
    %p76 = por %p74, %p75
    %p77 = scmp.ne.s32.totalorder %s63, %s64
    %p78 = scmp.eq.s32.totalorder %s14, 1
    %p79 = por %p77, %p78
    %p81 = scmp.ne.s32.totalorder %s64, %s80
    %p82 = scmp.eq.s32.totalorder %s14, 0
    %p83 = por %p81, %p82
    %s84 = ssub.s32 %s15, %s27
    %s85 = ssub.s32 %s16, %s23
    %s86 = sor.u32 %s84, %s85
    %p87 = scmp.eq.s32.totalorder %s86, 0
    %s89 = sadd.s32 %s88, 1
    %s90 = scalar_select %p87, %s88, %s89
    %p93 = pneg %p87
    %p94 = scmp.eq.s32.totalorder %s8, 1
    %p95 = por %p93, %p94
    %p96 = scmp.ne.s32.totalorder %s88, %s91
    %p97 = scmp.eq.s32.totalorder %s8, 0
    %p98 = por %p96, %p97
    %p99 = scmp.ne.s32.totalorder %s88, %s91
    %p100 = scmp.eq.s32.totalorder %s13, 1
    %p101 = por %p99, %p100
    %p102 = scmp.ne.s32.totalorder %s91, %s92
    %p103 = scmp.eq.s32.totalorder %s13, 0
    %p104 = por %p102, %p103
    %p105 = scmp.ne.s32.totalorder %s91, %s92
    %p106 = scmp.eq.s32.totalorder %s14, 1
    %p107 = por %p105, %p106
    %p109 = scmp.ne.s32.totalorder %s92, %s108
    %p110 = scmp.eq.s32.totalorder %s14, 0
    %p111 = por %p109, %p110
    %p112 = scmp.le.s32.totalorder 1, %s8
    %p113 = scmp.lt.s32.totalorder %s8, 3
    %p114 = pnand %p112, %p113
    %p115 = pneg %p114
    // Predicated region
    $region9: #{cross_entropy_loss_2d.1} parent=5 // pred_check
      _
    $region10: #{cross_entropy_loss_2d.1} parent=5 // pred_check_branch
      %117 = sbr.rel (%p114) target = $region12
    $region11: #{cross_entropy_loss_2d.1} parent=5 // pred_region
      %s118 = ssub.s32 %s8, 1
    $region12: #{cross_entropy_loss_2d.1} parent=5 // pred_fallthru
      _
    %p119 = scmp.lt.s32.totalorder %s8, 2
    // Predicated region
    $region13: #{cross_entropy_loss_2d.1} parent=5 // pred_check
      %p120 = pneg %p119
    $region14: #{cross_entropy_loss_2d.1} parent=5 // pred_check_branch
      %122 = sbr.rel (%p120) target = $region16
    $region15: #{cross_entropy_loss_2d.1} parent=5 // pred_region
      // Predicated region
      $region17: #{cross_entropy_loss_2d.1} parent=15 // pred_check
        %p123 = pneg %p42
      $region18: #{cross_entropy_loss_2d.1} parent=15 // pred_check_branch
        %125 = sbr.rel (%p123) target = $region20
      $region19: #{cross_entropy_loss_2d.1} parent=15 // pred_region
        %s126 = smul.u32 2, %s16
        %p127 = scmp.lt.s32.totalorder %s15, 1
        %s128 = scalar_select %p127, %s15, 1
        %p129 = scmp.lt.s32.totalorder %s126, 1
        %s130 = scalar_select %p129, %s126, 1
        %s131 = smul.addr %s128, 4
        %s132 = sadd.s32 %s130, %s131
        %s133 = smul.addr %s132, 8
        %s134 = scalar_lea.vmem %s0, %s133
        %s135 = smul.u32 2, %s16
      $region20: #{cross_entropy_loss_2d.1} parent=15 // pred_fallthru
        _
      // Predicated region
      $region21: #{cross_entropy_loss_2d.1} parent=15 // pred_check
        %p136 = pneg %p70
      $region22: #{cross_entropy_loss_2d.1} parent=15 // pred_check_branch
        %138 = sbr.rel (%p136) target = $region24
      $region23: #{cross_entropy_loss_2d.1} parent=15 // pred_region
        %s139 = smul.u32 2, %s16
        %p140 = scmp.lt.s32.totalorder %s15, 1
        %s141 = scalar_select %p140, %s15, 1
        %p142 = scmp.lt.s32.totalorder %s139, 1
        %s143 = scalar_select %p142, %s139, 1
        %s144 = smul.addr %s141, 2
        %s145 = sadd.s32 %s143, %s144
        %s146 = scalar_lea.vmem %s1, %s145
        %s147 = smul.u32 2, %s16
      $region24: #{cross_entropy_loss_2d.1} parent=15 // pred_fallthru
        _
    $region16: #{cross_entropy_loss_2d.1} parent=5 // pred_fallthru
      _
    %p148 = scmp.le.s32.totalorder 1, %s8
    %p149 = scmp.lt.s32.totalorder %s8, 3
    %p150 = pnand %p148, %p149
    %p151 = pneg %p150
    // Predicated region
    $region25: #{cross_entropy_loss_2d.1} parent=5 // pred_check
      _
    $region26: #{cross_entropy_loss_2d.1} parent=5 // pred_check_branch
      %153 = sbr.rel (%p150) target = $region28
    $region27: #{cross_entropy_loss_2d.1} parent=5 // pred_region
      %s154 = ssub.s32 %s8, 1
      %s155 = smul.u32 2, %s18
      %p156 = scmp.lt.s32.totalorder %s17, 1
      %s157 = scalar_select %p156, %s17, 1
      %p158 = scmp.lt.s32.totalorder %s155, 1
      %s159 = scalar_select %p158, %s155, 1
      %s160 = smul.addr %s157, 4
      %s161 = sadd.s32 %s159, %s160
      %s162 = smul.addr %s161, 8
      %s163 = scalar_lea.vmem %s0, %s162
      %p164 = pneg %p48
      %p165 = pneg %p45
      %s166 = smul.u32 2, %s18
      %p167 = scmp.lt.s32.totalorder %s17, 1
      %s168 = scalar_select %p167, %s17, 1
      %p169 = scmp.lt.s32.totalorder %s166, 1
      %s170 = scalar_select %p169, %s166, 1
      %s171 = smul.addr %s168, 2
      %s172 = sadd.s32 %s170, %s171
      %s173 = scalar_lea.vmem %s1, %s172
      %p174 = pneg %p76
      %p175 = pneg %p73
      %p176 = pneg %p104
      %p177 = pneg %p101
      %p178 = scmp.lt.s32.totalorder %s17, 1
      %s179 = scalar_select %p178, %s17, 1
      %p180 = scmp.lt.s32.totalorder %s18, 0
      %s181 = scalar_select %p180, %s18, 0
      %s182 = sadd.s32 %s181, %s179
      %s183 = smul.addr %s182, 2
      %s184 = scalar_lea.vmem %s2, %s183
      %s185 = smul.u32 2, %s18
      %p186 = scmp.lt.s32.totalorder %s17, 1
      %s187 = scalar_select %p186, %s17, 1
      %p188 = scmp.lt.s32.totalorder %s185, 1
      %s189 = scalar_select %p188, %s185, 1
      %s190 = smul.addr %s187, 4
      %s191 = sadd.s32 %s189, %s190
      %s192 = smul.addr %s191, 8
      %s193 = scalar_lea.vmem %s0, %s192
      %s194 = smul.u32 2, %s18
      %s195 = smul.u32 2, %s18
      %p196 = scmp.lt.s32.totalorder %s17, 1
      %s197 = scalar_select %p196, %s17, 1
      %p198 = scmp.lt.s32.totalorder %s195, 1
      %s199 = scalar_select %p198, %s195, 1
      %s200 = smul.addr %s197, 2
      %s201 = sadd.s32 %s199, %s200
      %s202 = scalar_lea.vmem %s1, %s201
      %s203 = smul.u32 2, %s18
      %p204 = scmp.lt.s32.totalorder %s17, 1
      %s205 = scalar_select %p204, %s17, 1
      %p206 = scmp.lt.s32.totalorder %s18, 0
      %s207 = scalar_select %p206, %s18, 0
      %s208 = sadd.s32 %s207, %s205
      %s209 = smul.addr %s208, 2
      %s210 = scalar_lea.vmem %s2, %s209
      %v211 = vld [vmem:[%s193] sm:$0xff]
      %v212 = vld [vmem:[%s193 + $0x8] sm:$0xff]
      %v213 = vld [vmem:[%s193 + $0x10] sm:$0x7]
      %v214 = vld [vmem:[%s193 + $0x18] sm:$0x7]
      %v215 = vld [vmem:[%s202] sm:$0x3]
      %v216 = vlaneseq
      %v217 = vshrl.u32 %v216, 7
      %v218 = vadd.s32 %v217, 8
      %v219 = vlaneseq
      %v220 = vshrl.u32 %v219, 7
      %v221 = vsub.s32 0, %v220
      %v222 = vrot.slane %v215, %v221
      %v223 = vlaneseq
      %v224 = vshrl.u32 %v223, 7
      %v225 = vsub.s32 1, %v224
      %v226 = vrot.slane %v215, %v225
      %vm227 = vcmp.eq.s32.totalorder %v217, %v222
      %vm228 = vcmp.eq.s32.totalorder %v217, %v226
      %vm229 = vcmp.eq.s32.totalorder %v218, %v222
      %vm230 = vcmp.eq.s32.totalorder %v218, %v226
      %vm231 = vcmp.eq.s32.totalorder %v217, 0
      %vm232 = vcmp.eq.s32.totalorder %v218, 0
      %v233 = vsel %vm231, 4.4286523, 0.0
      %v234 = vsel %vm232, 4.4286523, 0.0
      %vm235 = vcmp.eq.s32.totalorder %v217, 1
      %vm236 = vcmp.eq.s32.totalorder %v218, 1
      %v237 = vsel %vm235, 3.443227, %v233
      %v238 = vsel %vm236, 3.443227, %v234
      %vm239 = vcmp.eq.s32.totalorder %v217, 2
      %vm240 = vcmp.eq.s32.totalorder %v218, 2
      %v241 = vsel %vm239, 9.627174, %v237
      %v242 = vsel %vm240, 9.627174, %v238
      %vm243 = vcmp.eq.s32.totalorder %v217, 3
      %vm244 = vcmp.eq.s32.totalorder %v218, 3
      %v245 = vsel %vm243, 2.9082294, %v241
      %v246 = vsel %vm244, 2.9082294, %v242
      %vm247 = vcmp.eq.s32.totalorder %v217, 4
      %vm248 = vcmp.eq.s32.totalorder %v218, 4
      %v249 = vsel %vm247, 6.9883366, %v245
      %v250 = vsel %vm248, 6.9883366, %v246
      %vm251 = vcmp.eq.s32.totalorder %v217, 5
      %vm252 = vcmp.eq.s32.totalorder %v218, 5
      %v253 = vsel %vm251, 5.2119217, %v249
      %v254 = vsel %vm252, 5.2119217, %v250
      %vm255 = vcmp.eq.s32.totalorder %v217, 6
      %vm256 = vcmp.eq.s32.totalorder %v218, 6
      %v257 = vsel %vm255, 9.490196, %v253
      %v258 = vsel %vm256, 9.490196, %v254
      %vm259 = vcmp.eq.s32.totalorder %v217, 7
      %vm260 = vcmp.eq.s32.totalorder %v218, 7
      %v261 = vsel %vm259, 9.150478, %v257
      %v262 = vsel %vm260, 9.150478, %v258
      %vm263 = vcmp.eq.s32.totalorder %v217, 8
      %vm264 = vcmp.eq.s32.totalorder %v218, 8
      %v265 = vsel %vm263, 7.1654587, %v261
      %v266 = vsel %vm264, 7.1654587, %v262
      %vm267 = vcmp.eq.s32.totalorder %v217, 9
      %vm268 = vcmp.eq.s32.totalorder %v218, 9
      %v269 = vsel %vm267, 9.888601, %v265
      %v270 = vsel %vm268, 9.888601, %v266
      %vm271 = vcmp.eq.s32.totalorder %v217, 10
      %vm272 = vcmp.eq.s32.totalorder %v218, 10
      %v273 = vsel %vm271, 7.5455384, %v269
      %v274 = vsel %vm272, 7.5455384, %v270
      %vm275 = vcmask 1042432
      %v276 = vsel %vm275, %v213, -inf
      %v277 = vmax.f32 %v211, %v276
      %v278 = vrot.slane %v277, 4
      %v279 = vmax.f32 %v277, %v278
      %v280 = vrot.slane %v279, 2
      %v281 = vmax.f32 %v279, %v280
      %v282 = vrot.slane %v281, 1
      %v283 = vmax.f32 %v281, %v282
      %v284 = vsel %vm275, %v214, -inf
      %v285 = vmax.f32 %v212, %v284
      %v286 = vrot.slane %v285, 4
      %v287 = vmax.f32 %v285, %v286
      %v288 = vrot.slane %v287, 2
      %v289 = vmax.f32 %v287, %v288
      %v290 = vrot.slane %v289, 1
      %v291 = vmax.f32 %v289, %v290
      %v292 = vsel %vm227, %v211, 0.0
      %v293 = vsel %vm228, %v212, 0.0
      %v294 = vsel %vm229, %v213, 0.0
      %v295 = vsel %vm230, %v214, 0.0
      %v296 = vsel %vm275, %v294, 0.0
      %v297 = vadd.f32 %v292, %v296
      %v298 = vrot.slane %v297, 4
      %v299 = vadd.f32 %v297, %v298
      %v300 = vrot.slane %v299, 2
      %v301 = vadd.f32 %v299, %v300
      %v302 = vrot.slane %v301, 1
      %v303 = vadd.f32 %v301, %v302
      %v304 = vsel %vm275, %v295, 0.0
      %v305 = vadd.f32 %v293, %v304
      %v306 = vrot.slane %v305, 4
      %v307 = vadd.f32 %v305, %v306
      %v308 = vrot.slane %v307, 2
      %v309 = vadd.f32 %v307, %v308
      %v310 = vrot.slane %v309, 1
      %v311 = vadd.f32 %v309, %v310
      %v312 = vsub.f32 %v211, %v283
      %v313 = vsub.f32 %v212, %v291
      %v314 = vsub.f32 %v213, %v283
      %v315 = vsub.f32 %v214, %v291
      %v316 = vmul.f32 %v312, 1.442695
      %v317 = vpow.pop %v316
      %v318 = vmul.f32 %v313, 1.442695
      %v319 = vpow.pop %v318
      %v320 = vmul.f32 %v314, 1.442695
      %v321 = vpow.pop %v320
      %v322 = vmul.f32 %v315, 1.442695
      %v323 = vpow.pop %v322
      %v324 = vsel %vm275, %v321, 0.0
      %v325 = vadd.f32 %v317, %v324
      %v326 = vrot.slane %v325, 4
      %v327 = vadd.f32 %v325, %v326
      %v328 = vrot.slane %v327, 2
      %v329 = vadd.f32 %v327, %v328
      %v330 = vrot.slane %v329, 1
      %v331 = vadd.f32 %v329, %v330
      %v332 = vsel %vm275, %v323, 0.0
      %v333 = vadd.f32 %v319, %v332
      %v334 = vrot.slane %v333, 4
      %v335 = vadd.f32 %v333, %v334
      %v336 = vrot.slane %v335, 2
      %v337 = vadd.f32 %v335, %v336
      %v338 = vrot.slane %v337, 1
      %v339 = vadd.f32 %v337, %v338
      %v340 = vlog2.pop %v331
      %v341 = vmul.f32 %v340, 0.6931472
      %v342 = vlog2.pop %v339
      %v343 = vmul.f32 %v342, 0.6931472
      %v344 = vadd.f32 %v341, %v283
      %v345 = vadd.f32 %v343, %v291
      %v346 = vsel %vm227, %v273, 0.0
      %v347 = vsel %vm228, %v273, 0.0
      %v348 = vsel %vm229, %v274, 0.0
      %v349 = vsel %vm230, %v274, 0.0
      %v350 = vsel %vm275, %v348, 0.0
      %v351 = vadd.f32 %v346, %v350
      %v352 = vrot.slane %v351, 4
      %v353 = vadd.f32 %v351, %v352
      %v354 = vrot.slane %v353, 2
      %v355 = vadd.f32 %v353, %v354
      %v356 = vrot.slane %v355, 1
      %v357 = vadd.f32 %v355, %v356
      %v358 = vsel %vm275, %v349, 0.0
      %v359 = vadd.f32 %v347, %v358
      %v360 = vrot.slane %v359, 4
      %v361 = vadd.f32 %v359, %v360
      %v362 = vrot.slane %v361, 2
      %v363 = vadd.f32 %v361, %v362
      %v364 = vrot.slane %v363, 1
      %v365 = vadd.f32 %v363, %v364
      %v366 = vsub.f32 %v303, %v344
      %v367 = vsub.f32 %v311, %v345
      %v368 = vmul.f32 %v357, %v366
      %v369 = vmul.f32 %v365, %v367
      %vm370 = vcmask 1040384
      %v371 = vsel %vm370, %v368, 0.0
      %v372 = vsel %vm370, %v369, 0.0
      %v373 = vadd.f32 %v371, %v372
      %374 = vadd.xlane.f32.xlu0 %v373
      %v375 = vpop.xlane.xlu0 %374
      %v376 = vrot.slane %v375, 4
      %v377 = vadd.f32 %v375, %v376
      %v378 = vrot.slane %v377, 2
      %v379 = vadd.f32 %v377, %v378
      %v380 = vrot.slane %v379, 1
      %v381 = vadd.f32 %v379, %v380
      %s382 = vtos %v381
      %v383 = vstv %s382
      %384 = vst [vmem:[%s210] sm:$0x1] %v383
      %v385 = vsel %vm370, %v357, 0.0
      %v386 = vsel %vm370, %v365, 0.0
      %v387 = vadd.f32 %v385, %v386
      %388 = vadd.xlane.f32.xlu0 %v387
      %v389 = vpop.xlane.xlu0 %388
      %v390 = vrot.slane %v389, 4
      %v391 = vadd.f32 %v389, %v390
      %v392 = vrot.slane %v391, 2
      %v393 = vadd.f32 %v391, %v392
      %v394 = vrot.slane %v393, 1
      %v395 = vadd.f32 %v393, %v394
      %s396 = vtos %v395
      %v397 = vstv %s396
      %398 = vst [vmem:[%s210 + $0x1] sm:$0x1] %v397
      %p399 = scmp.lt.s32.totalorder %s17, 1
      %s400 = scalar_select %p399, %s17, 1
      %p401 = scmp.lt.s32.totalorder %s18, 0
      %s402 = scalar_select %p401, %s18, 0
      %s403 = sadd.s32 %s402, %s400
      %s404 = smul.addr %s403, 2
      %s405 = scalar_lea.vmem %s2, %s404
      // Predicated region
      $region29: #{cross_entropy_loss_2d.1} parent=27 // pred_check
        %p406 = pneg %p101
      $region30: #{cross_entropy_loss_2d.1} parent=27 // pred_check_branch
        %408 = sbr.rel (%p406) target = $region32
      $region31: #{cross_entropy_loss_2d.1} parent=27 // pred_region
        _
      $region32: #{cross_entropy_loss_2d.1} parent=27 // pred_fallthru
        _
    $region28: #{cross_entropy_loss_2d.1} parent=5 // pred_fallthru
      _
    %p409 = scmp.le.s32.totalorder 2, %s8
    // Predicated region
    $region33: #{cross_entropy_loss_2d.1} parent=5 // pred_check
      %p410 = pneg %p409
    $region34: #{cross_entropy_loss_2d.1} parent=5 // pred_check_branch
      %412 = sbr.rel (%p410) target = $region36
    $region35: #{cross_entropy_loss_2d.1} parent=5 // pred_region
      %s413 = ssub.s32 %s8, 2
      // Predicated region
      $region37: #{cross_entropy_loss_2d.1} parent=35 // pred_check
        %p414 = pneg %p107
      $region38: #{cross_entropy_loss_2d.1} parent=35 // pred_check_branch
        %416 = sbr.rel (%p414) target = $region40
      $region39: #{cross_entropy_loss_2d.1} parent=35 // pred_region
        %p417 = scmp.lt.s32.totalorder %s19, 1
        %s418 = scalar_select %p417, %s19, 1
        %p419 = scmp.lt.s32.totalorder %s20, 0
        %s420 = scalar_select %p419, %s20, 0
        %s421 = sadd.s32 %s420, %s418
        %s422 = smul.addr %s421, 2
        %s423 = scalar_lea.vmem %s2, %s422
      $region40: #{cross_entropy_loss_2d.1} parent=35 // pred_fallthru
        _
    $region36: #{cross_entropy_loss_2d.1} parent=5 // pred_fallthru
      _
  $region6: #{cross_entropy_loss_2d.1} parent=0 // loop_footer
    %s12 = sadd.s32 1, %s8
  $region7: #{cross_entropy_loss_2d.1} parent=0 // loop_footer_branch
    %7 = sbr.rel target = $region3
  $region8: #{cross_entropy_loss_2d.1} parent=0 // loop_exit
    _

</llo_original>
